<compile_context>
chip_gen: v7x
topology: tpu7x:2x2x1
jax: 0.10.0
libtpu: 0.0.40
codegen_flags: <defaults>
</compile_context>

<pallas_src>
import functools

import jax
import jax.numpy as jnp
from jax.experimental import pallas as pl
from jax.experimental.pallas import tpu as pltpu


LANE = 128  # TPU lane width: keep the output feature dim a multiple of this.


def _round_up(n: int, m: int) -> int:
    return ((n + m - 1) // m) * m


def mlp_kernel(x_ref, w1_ref, b1_ref, w2_ref, b2_ref, o_ref):
    # fc1: (TM, 784) @ (784, Hp) with f32 accumulation on the MXU.
    h = jnp.dot(x_ref[...], w1_ref[...], preferred_element_type=jnp.float32)
    h = jnp.maximum(h + b1_ref[...].astype(jnp.float32), 0.0)   # bias + ReLU in f32 (VPU)
    # fc2: (TM, Hp) @ (Hp, Hp); feed the MXU in the weights' dtype (bf16 fast path).
    out = jnp.dot(h.astype(w2_ref.dtype), w2_ref[...],
                  preferred_element_type=jnp.float32)
    out = out + b2_ref[...].astype(jnp.float32)
    o_ref[...] = out.astype(o_ref.dtype)


def prepare_mlp_params(w1, b1, w2, b2, *, param_dtype=jnp.float32):
    """One-time prep: nn.Linear (out,in) weights -> (in, out_pad) lane-dense.

    Zero-padding the feature dim to a multiple of 128 keeps the padded hidden
    and output columns exactly zero (ReLU(0 + 0) = 0, zero weights/bias), so
    slicing [:, :out_dim] after the kernel recovers the exact result.
    """
    out_dim, _ = w1.shape
    h_pad = _round_up(out_dim, LANE)

    def pad_cols(a, cols):
        return jnp.pad(a, ((0, 0), (0, cols - a.shape[1])))

    w1_p = pad_cols(w1.T, h_pad).astype(param_dtype)                  # (784, Hp)
    b1_p = pad_cols(b1.reshape(1, -1), h_pad).astype(param_dtype)     # (1, Hp)
    w2_p = jnp.pad(w2.T, ((0, h_pad - out_dim), (0, h_pad - out_dim))
                   ).astype(param_dtype)                              # (Hp, Hp)
    b2_p = pad_cols(b2.reshape(1, -1), h_pad).astype(param_dtype)     # (1, Hp)
    return (w1_p, b1_p, w2_p, b2_p), out_dim


@functools.partial(
    jax.jit,
    static_argnames=("out_dim", "block_m", "out_dtype", "activation_dtype"))
def mlp_net_forward(x, params, *, out_dim, block_m=1024,
                    out_dtype=jnp.float32, activation_dtype=None):
    """x: (B, 1, 28, 28) NCHW. Returns encodings (B, out_dim).

    If x already arrives in bf16 (recommended: cast at the producer, not here)
    and params were prepared with param_dtype=bf16, the dominant HBM read
    stream is halved while keeping f32 accumulation in-kernel.
    """
    w1_p, b1_p, w2_p, b2_p = params
    B = x.shape[0]
    x_flat = x.reshape(B, -1)                         # flatten(1) -> (B, 784)
    if not jnp.issubdtype(x_flat.dtype, jnp.floating):
        x_flat = x_flat.astype(jnp.float32)
    if activation_dtype is not None and x_flat.dtype != jnp.dtype(activation_dtype):
        # NOTE: this cast is itself an HBM round-trip; prefer producing x in
        # the target dtype upstream instead of relying on this.
        x_flat = x_flat.astype(activation_dtype)
    in_dim = x_flat.shape[1]
    h_pad = w1_p.shape[1]

    # Only pad in the rare B % 8 != 0 case (<= 7 rows) so the out block keeps
    # an 8-sublane-aligned dim.  B % tm != 0 is handled by the ragged last
    # grid block (Pallas masks the edge stores), NOT by a full-array copy.
    b8 = _round_up(B, 8)
    if b8 != B:
        x_flat = jnp.pad(x_flat, ((0, b8 - B), (0, 0)))

    # Batch tile: cap so large batches produce >= 4 grid steps (feeds both
    # v7x TensorCores and keeps x/out DMAs pipelined against compute), and
    # never exceed block_m (VMEM headroom) or the padded batch itself.
    tm = min(block_m, _round_up(pl.cdiv(b8, 4), 8))
    tm = max(8, min(tm, b8))
    n_steps = pl.cdiv(b8, tm)

    # Raise the scoped-VMEM limit only when the double-buffered tiles +
    # resident weights would be tight under v5e's 16 MiB default.
    x_bytes = jnp.dtype(x_flat.dtype).itemsize
    w_bytes = jnp.dtype(w1_p.dtype).itemsize
    o_bytes = jnp.dtype(out_dtype).itemsize
    vmem_est = (2 * tm * in_dim * x_bytes                      # x tiles (double-buffered)
                + 2 * tm * h_pad * o_bytes                     # out tiles
                + 2 * (in_dim * h_pad + h_pad * h_pad + 2 * h_pad) * w_bytes)
    cp_kwargs = dict(dimension_semantics=("parallel",))        # megacore-shardable
    if vmem_est + (4 << 20) > (16 << 20):
        cp_kwargs["vmem_limit_bytes"] = int(vmem_est + (8 << 20))

    resident = lambda i: (0, 0)                                 # weights stay in VMEM

    out = pl.pallas_call(
        mlp_kernel,
        out_shape=jax.ShapeDtypeStruct((b8, h_pad), out_dtype),
        grid=(n_steps,),
        in_specs=[
            pl.BlockSpec((tm, in_dim), lambda i: (i, 0)),       # x tile (pipelined)
            pl.BlockSpec((in_dim, h_pad), resident),            # W1 (784, Hp)
            pl.BlockSpec((1, h_pad), resident),                 # b1
            pl.BlockSpec((h_pad, h_pad), resident),             # W2 (Hp, Hp)
            pl.BlockSpec((1, h_pad), resident),                 # b2
        ],
        out_specs=pl.BlockSpec((tm, h_pad), lambda i: (i, 0)),  # lane-dense out
        compiler_params=pltpu.CompilerParams(**cp_kwargs),
    )(x_flat, w1_p, b1_p, w2_p, b2_p)

    return out[:B, :out_dim]                                    # strip padding (glue)


def reference_forward(x, w1, b1, w2, b2):
    x_flat = x.reshape(x.shape[0], -1)
    h = jnp.maximum(x_flat @ w1.T + b1, 0.0)
    return h @ w2.T + b2


if __name__ == "__main__":
    key = jax.random.PRNGKey(0)
    k_x, k_w1, k_b1, k_w2, k_b2 = jax.random.split(key, 5)

    batch = 8
    output_dim = 64
    in_dim = 28 * 28

    # Deterministic synthetic params (shapes match nn.Linear in the module).
    x = jax.random.normal(k_x, (batch, 1, 28, 28), dtype=jnp.float32)
    w1 = jax.random.normal(k_w1, (output_dim, in_dim), dtype=jnp.float32) * 0.02
    b1 = jax.random.normal(k_b1, (output_dim,), dtype=jnp.float32) * 0.02
    w2 = jax.random.normal(k_w2, (output_dim, output_dim), dtype=jnp.float32) * 0.02
    b2 = jax.random.normal(k_b2, (output_dim,), dtype=jnp.float32) * 0.02

    ref = reference_forward(x, w1, b1, w2, b2)

    # --- exact path (f32 params + activations): matches module semantics ---
    params_f32, out_dim = prepare_mlp_params(w1, b1, w2, b2, param_dtype=jnp.float32)
    encodings = mlp_net_forward(x, params_f32, out_dim=out_dim)
    jax.block_until_ready(encodings)
    assert encodings.shape == (batch, output_dim)
    assert jnp.allclose(encodings, ref, atol=1e-4, rtol=1e-4)

    # --- bandwidth-optimized serving path (per perf review): bf16 activation
    # stream + bf16 params, f32 MXU accumulation. Relaxed tolerance is the
    # expected precision tradeoff. ---
    params_bf16, _ = prepare_mlp_params(w1, b1, w2, b2, param_dtype=jnp.bfloat16)
    x_bf16 = x.astype(jnp.bfloat16)   # in production, emit bf16 at the producer
    encodings_bf16 = mlp_net_forward(x_bf16, params_bf16, out_dim=out_dim)
    jax.block_until_ready(encodings_bf16)
    assert encodings_bf16.shape == (batch, output_dim)
    assert jnp.allclose(encodings_bf16.astype(jnp.float32), ref, atol=3e-2, rtol=3e-2)

    # TODO(synk): BackboneOutput is a plain dataclass wrapper; the kernel
    # returns the `encodings` tensor directly.
    print("KERNEL_OK")
</pallas_src>

<mosaic_0001>
module attributes {stable_mosaic.version = 11 : i64} {
  func.func @mlp_kernel(%arg0: i32, %arg1: memref<8x784xf32, #tpu.memory_space<vmem>>, %arg2: memref<784x128xf32, #tpu.memory_space<vmem>>, %arg3: memref<1x128xf32, #tpu.memory_space<vmem>>, %arg4: memref<128x128xf32, #tpu.memory_space<vmem>>, %arg5: memref<1x128xf32, #tpu.memory_space<vmem>>, %arg6: memref<8x128xf32, #tpu.memory_space<vmem>>) attributes {dimension_semantics = [#tpu.dimension_semantics<parallel>], iteration_bounds = array<i64: 1>, scalar_prefetch = 0 : i64, scratch_operands = 0 : i64, tpu.core_type = #tpu.core_type<tc>, window_params = [{transform_indices = @transform_0, window_bounds = array<i64: 8, 784>}, {pipeline_mode = #tpu.pipeline_mode<synchronous>, transform_indices = @transform_1, window_bounds = array<i64: 784, 128>}, {pipeline_mode = #tpu.pipeline_mode<synchronous>, transform_indices = @transform_2, window_bounds = array<i64: 1, 128>}, {pipeline_mode = #tpu.pipeline_mode<synchronous>, transform_indices = @transform_3, window_bounds = array<i64: 128, 128>}, {pipeline_mode = #tpu.pipeline_mode<synchronous>, transform_indices = @transform_4, window_bounds = array<i64: 1, 128>}, {transform_indices = @transform_5, window_bounds = array<i64: 8, 128>}]} {
    %c0 = arith.constant 0 : index
    %c0_0 = arith.constant 0 : index
    %0 = vector.load %arg1[%c0, %c0_0] : memref<8x784xf32, #tpu.memory_space<vmem>>, vector<8x784xf32>
    %c0_1 = arith.constant 0 : index
    %c0_2 = arith.constant 0 : index
    %1 = vector.load %arg2[%c0_1, %c0_2] : memref<784x128xf32, #tpu.memory_space<vmem>>, vector<784x128xf32>
    %cst = arith.constant dense<0.000000e+00> : vector<8x128xf32>
    %2 = tpu.matmul %0, %1, %cst {dimension_numbers = #tpu.dot_dimension_numbers<[1], [0], [0], [1], [0, 0, 1, 1], [], []>} : vector<8x784xf32>, vector<784x128xf32>, vector<8x128xf32> -> vector<8x128xf32>
    %c0_3 = arith.constant 0 : index
    %c0_4 = arith.constant 0 : index
    %3 = vector.load %arg3[%c0_3, %c0_4] : memref<1x128xf32, #tpu.memory_space<vmem>>, vector<1x128xf32>
    %4 = vector.broadcast %3 : vector<1x128xf32> to vector<8x128xf32>
    %5 = arith.addf %2, %4 : vector<8x128xf32>
    %cst_5 = arith.constant 0.000000e+00 : f32
    %6 = vector.broadcast %cst_5 : f32 to vector<8x128xf32>
    %7 = arith.maximumf %5, %6 : vector<8x128xf32>
    %c0_6 = arith.constant 0 : index
    %c0_7 = arith.constant 0 : index
    %8 = vector.load %arg4[%c0_6, %c0_7] : memref<128x128xf32, #tpu.memory_space<vmem>>, vector<128x128xf32>
    %cst_8 = arith.constant dense<0.000000e+00> : vector<8x128xf32>
    %9 = tpu.matmul %7, %8, %cst_8 {dimension_numbers = #tpu.dot_dimension_numbers<[1], [0], [0], [1], [0, 0, 1, 1], [], []>} : vector<8x128xf32>, vector<128x128xf32>, vector<8x128xf32> -> vector<8x128xf32>
    %c0_9 = arith.constant 0 : index
    %c0_10 = arith.constant 0 : index
    %10 = vector.load %arg5[%c0_9, %c0_10] : memref<1x128xf32, #tpu.memory_space<vmem>>, vector<1x128xf32>
    %11 = vector.broadcast %10 : vector<1x128xf32> to vector<8x128xf32>
    %12 = arith.addf %9, %11 : vector<8x128xf32>
    %c0_11 = arith.constant 0 : index
    %c0_12 = arith.constant 0 : index
    %13 = vector.load %arg6[%c0_11, %c0_12] : memref<8x128xf32, #tpu.memory_space<vmem>>, vector<8x128xf32>
    tpu.vector_store %arg6[%c0_11, %c0_12], %12 {strides = array<i32>} : memref<8x128xf32, #tpu.memory_space<vmem>>, vector<8x128xf32>,
    return
  }
  func.func @transform_0(%arg0: i32) -> (i32, i32) {
    %c0_i32 = arith.constant 0 : i32
    %c0_i32_0 = arith.constant 0 : i32
    return %arg0, %c0_i32 : i32, i32
  }
  func.func @transform_1(%arg0: i32) -> (i32, i32) {
    %c0_i32 = arith.constant 0 : i32
    %c0_i32_0 = arith.constant 0 : i32
    %c0_i32_1 = arith.constant 0 : i32
    return %c0_i32, %c0_i32_0 : i32, i32
  }
  func.func @transform_2(%arg0: i32) -> (i32, i32) {
    %c0_i32 = arith.constant 0 : i32
    %c0_i32_0 = arith.constant 0 : i32
    %c0_i32_1 = arith.constant 0 : i32
    return %c0_i32, %c0_i32_0 : i32, i32
  }
  func.func @transform_3(%arg0: i32) -> (i32, i32) {
    %c0_i32 = arith.constant 0 : i32
    %c0_i32_0 = arith.constant 0 : i32
    %c0_i32_1 = arith.constant 0 : i32
    return %c0_i32, %c0_i32_0 : i32, i32
  }
  func.func @transform_4(%arg0: i32) -> (i32, i32) {
    %c0_i32 = arith.constant 0 : i32
    %c0_i32_0 = arith.constant 0 : i32
    %c0_i32_1 = arith.constant 0 : i32
    return %c0_i32, %c0_i32_0 : i32, i32
  }
  func.func @transform_5(%arg0: i32) -> (i32, i32) {
    %c0_i32 = arith.constant 0 : i32
    %c0_i32_0 = arith.constant 0 : i32
    return %arg0, %c0_i32 : i32, i32
  }
}

</mosaic_0001>

<llo_original>
// kernel: mlp_net_forward.1
$region0: #{mlp_net_forward.1}
  #allocation0 [shape = 'u32[]', space=smem, size = 0x4, offset = 0x4, fixed_abs, tag = 'smem constant byte address 0x4 - core index']
  #allocation1 [shape = 'u32[144,128]{1,0:T(1,128)}', space=vmem, size = 0x12000, scoped, tag = 'internal scratch']
  %s0 = inlined_call_operand.vmem [shape: f32[8,784], index: 0, kind: input, shape index: {}]
  %s1 = inlined_call_operand.vmem [shape: f32[784,128], index: 1, kind: input, shape index: {}]
  %s2 = inlined_call_operand.vmem [shape: f32[1,128], index: 2, kind: input, shape index: {}]
  %s3 = inlined_call_operand.hbm [shape: f32[128,128], index: 3, kind: input, shape index: {}]
  %s4 = inlined_call_operand.vmem [shape: f32[1,128], index: 4, kind: input, shape index: {}]
  %s5 = inlined_call_operand.hbm [shape: f32[8,128], index: 5, kind: output, shape index: {}]
  %s6 = sld [smem:[#allocation0]]
  $region34: #{mlp_net_forward.1} parent=0
    _
  %s8 = ssub.s32 1, %s6
  %s9 = scalar_select 0, %s8, %s6
  $region1: #{mlp_net_forward.1} parent=0
    #allocation2 [shape = 'u8[65536]{0}', space=vmem, size = 0x10000, scoped, tag = 'input window, operand 3, single buffered']
    #allocation3 [shape = 's32[1]{0}', space=sflag, size = 0x4, scoped, tag = 'scoped memory for mlp_net_forward.1']
    #allocation4 [shape = 's32[1]{0}', space=sflag, size = 0x4, scoped, tag = 'scoped memory for mlp_net_forward.1']
    #allocation5 [shape = 'u8[4096]{0}', space=vmem, size = 0x1000, scoped, tag = 'output window, operand 0, single buffered']
    %10 = vsyncpa [#allocation3], 0
    %11 = vsyncpa [#allocation4], 0
    // Predicated region
    $region2: #{mlp_net_forward.1} parent=1 // pred_check
      _
    $region3: #{mlp_net_forward.1} parent=1 // pred_check_branch
      %13 = sbr.rel (0) target = $region5
    $region4: #{mlp_net_forward.1} parent=1 // pred_region
      _
    $region5: #{mlp_net_forward.1} parent=1 // pred_fallthru
      _
    // Predicated region
    $region6: #{mlp_net_forward.1} parent=1 // pred_check
      _
    $region7: #{mlp_net_forward.1} parent=1 // pred_check_branch
      %15 = sbr.rel (0) target = $region9
    $region8: #{mlp_net_forward.1} parent=1 // pred_region
      _
    $region9: #{mlp_net_forward.1} parent=1 // pred_fallthru
      _
    // Predicated region
    $region10: #{mlp_net_forward.1} parent=1 // pred_check
      _
    $region11: #{mlp_net_forward.1} parent=1 // pred_check_branch
      %17 = sbr.rel (0) target = $region13
    $region12: #{mlp_net_forward.1} parent=1 // pred_region
      _
    $region13: #{mlp_net_forward.1} parent=1 // pred_fallthru
      _
    // Predicated region
    $region14: #{mlp_net_forward.1} parent=1 // pred_check
      _
    $region15: #{mlp_net_forward.1} parent=1 // pred_check_branch
      %19 = sbr.rel (0) target = $region17
    $region16: #{mlp_net_forward.1} parent=1 // pred_region
      %s21 = ssub.s32 2048, 2048
      %22 = vsyncadd [#allocation3], %s21
      %s23 = sshll.u32 [#allocation2], 4
      %s24 = int_to_ptr.vmem [resolvable:$true] %s23
      %29 = dma.hbm_to_vmem [thread:$0]  %s3, 2048, %s24, [#allocation3], 128, 128, 8
    $region17: #{mlp_net_forward.1} parent=1 // pred_fallthru
      _
    // Predicated region
    $region18: #{mlp_net_forward.1} parent=1 // pred_check
      _
    $region19: #{mlp_net_forward.1} parent=1 // pred_check_branch
      %31 = sbr.rel (0) target = $region21
    $region20: #{mlp_net_forward.1} parent=1 // pred_region
      _
    $region21: #{mlp_net_forward.1} parent=1 // pred_fallthru
      _
    // Predicated region
    $region22: #{mlp_net_forward.1} parent=1 // pred_check
      _
    $region23: #{mlp_net_forward.1} parent=1 // pred_check_branch
      %33 = sbr.rel (0) target = $region25
    $region24: #{mlp_net_forward.1} parent=1 // pred_region
      %34 = dma.done [#allocation3], 2048
    $region25: #{mlp_net_forward.1} parent=1 // pred_fallthru
      _
    %v35 = vld [vmem:[%s0] sm:$0xff]
    %v36 = vld [vmem:[%s0 + $0x8] sm:$0xff]
    %v37 = vld [vmem:[%s0 + $0x10] sm:$0xff]
    %v38 = vld [vmem:[%s0 + $0x18] sm:$0xff]
    %v39 = vld [vmem:[%s0 + $0x20] sm:$0xff]
    %v40 = vld [vmem:[%s0 + $0x28] sm:$0xff]
    %v41 = vld [vmem:[%s0 + $0x30] sm:$0xff]
    %v42 = vld [vmem:[%s1] sm:$0xff]
    %v43 = vld [vmem:[%s1 + $0x8] sm:$0xff]
    %v44 = vld [vmem:[%s1 + $0x10] sm:$0xff]
    %v45 = vld [vmem:[%s1 + $0x18] sm:$0xff]
    %v46 = vld [vmem:[%s1 + $0x20] sm:$0xff]
    %v47 = vld [vmem:[%s1 + $0x28] sm:$0xff]
    %v48 = vld [vmem:[%s1 + $0x30] sm:$0xff]
    %v49 = vld [vmem:[%s1 + $0x38] sm:$0xff]
    %v50 = vld [vmem:[%s1 + $0x40] sm:$0xff]
    %v51 = vld [vmem:[%s1 + $0x48] sm:$0xff]
    %v52 = vld [vmem:[%s1 + $0x50] sm:$0xff]
    %v53 = vld [vmem:[%s1 + $0x58] sm:$0xff]
    %v54 = vld [vmem:[%s1 + $0x60] sm:$0xff]
    %v55 = vld [vmem:[%s1 + $0x68] sm:$0xff]
    %v56 = vld [vmem:[%s1 + $0x70] sm:$0xff]
    %v57 = vld [vmem:[%s1 + $0x78] sm:$0xff]
    %v58 = vld [vmem:[%s1 + $0x80] sm:$0xff]
    %v59 = vld [vmem:[%s1 + $0x88] sm:$0xff]
    %v60 = vld [vmem:[%s1 + $0x90] sm:$0xff]
    %v61 = vld [vmem:[%s1 + $0x98] sm:$0xff]
    %v62 = vld [vmem:[%s1 + $0xa0] sm:$0xff]
    %v63 = vld [vmem:[%s1 + $0xa8] sm:$0xff]
    %v64 = vld [vmem:[%s1 + $0xb0] sm:$0xff]
    %v65 = vld [vmem:[%s1 + $0xb8] sm:$0xff]
    %v66 = vld [vmem:[%s1 + $0xc0] sm:$0xff]
    %v67 = vld [vmem:[%s1 + $0xc8] sm:$0xff]
    %v68 = vld [vmem:[%s1 + $0xd0] sm:$0xff]
    %v69 = vld [vmem:[%s1 + $0xd8] sm:$0xff]
    %v70 = vld [vmem:[%s1 + $0xe0] sm:$0xff]
    %v71 = vld [vmem:[%s1 + $0xe8] sm:$0xff]
    %v72 = vld [vmem:[%s1 + $0xf0] sm:$0xff]
    %v73 = vld [vmem:[%s1 + $0xf8] sm:$0xff]
    %v74 = vld [vmem:[%s1 + $0x100] sm:$0xff]
    %v75 = vld [vmem:[%s1 + $0x108] sm:$0xff]
    %v76 = vld [vmem:[%s1 + $0x110] sm:$0xff]
    %v77 = vld [vmem:[%s1 + $0x118] sm:$0xff]
    %v78 = vld [vmem:[%s1 + $0x120] sm:$0xff]
    %v79 = vld [vmem:[%s1 + $0x128] sm:$0xff]
    %v80 = vld [vmem:[%s1 + $0x130] sm:$0xff]
    %v81 = vld [vmem:[%s1 + $0x138] sm:$0xff]
    %v82 = vld [vmem:[%s1 + $0x140] sm:$0xff]
    %v83 = vld [vmem:[%s1 + $0x148] sm:$0xff]
    %v84 = vld [vmem:[%s1 + $0x150] sm:$0xff]
    %v85 = vld [vmem:[%s1 + $0x158] sm:$0xff]
    %v86 = vld [vmem:[%s1 + $0x160] sm:$0xff]
    %v87 = vld [vmem:[%s1 + $0x168] sm:$0xff]
    %v88 = vld [vmem:[%s1 + $0x170] sm:$0xff]
    %v89 = vld [vmem:[%s1 + $0x178] sm:$0xff]
    %v90 = vld [vmem:[%s1 + $0x180] sm:$0xff]
    %v91 = vld [vmem:[%s1 + $0x188] sm:$0xff]
    %v92 = vld [vmem:[%s1 + $0x190] sm:$0xff]
    %v93 = vld [vmem:[%s1 + $0x198] sm:$0xff]
    %v94 = vld [vmem:[%s1 + $0x1a0] sm:$0xff]
    %v95 = vld [vmem:[%s1 + $0x1a8] sm:$0xff]
    %v96 = vld [vmem:[%s1 + $0x1b0] sm:$0xff]
    %v97 = vld [vmem:[%s1 + $0x1b8] sm:$0xff]
    %v98 = vld [vmem:[%s1 + $0x1c0] sm:$0xff]
    %v99 = vld [vmem:[%s1 + $0x1c8] sm:$0xff]
    %v100 = vld [vmem:[%s1 + $0x1d0] sm:$0xff]
    %v101 = vld [vmem:[%s1 + $0x1d8] sm:$0xff]
    %v102 = vld [vmem:[%s1 + $0x1e0] sm:$0xff]
    %v103 = vld [vmem:[%s1 + $0x1e8] sm:$0xff]
    %v104 = vld [vmem:[%s1 + $0x1f0] sm:$0xff]
    %v105 = vld [vmem:[%s1 + $0x1f8] sm:$0xff]
    %v106 = vld [vmem:[%s1 + $0x200] sm:$0xff]
    %v107 = vld [vmem:[%s1 + $0x208] sm:$0xff]
    %v108 = vld [vmem:[%s1 + $0x210] sm:$0xff]
    %v109 = vld [vmem:[%s1 + $0x218] sm:$0xff]
    %v110 = vld [vmem:[%s1 + $0x220] sm:$0xff]
    %v111 = vld [vmem:[%s1 + $0x228] sm:$0xff]
    %v112 = vld [vmem:[%s1 + $0x230] sm:$0xff]
    %v113 = vld [vmem:[%s1 + $0x238] sm:$0xff]
    %v114 = vld [vmem:[%s1 + $0x240] sm:$0xff]
    %v115 = vld [vmem:[%s1 + $0x248] sm:$0xff]
    %v116 = vld [vmem:[%s1 + $0x250] sm:$0xff]
    %v117 = vld [vmem:[%s1 + $0x258] sm:$0xff]
    %v118 = vld [vmem:[%s1 + $0x260] sm:$0xff]
    %v119 = vld [vmem:[%s1 + $0x268] sm:$0xff]
    %v120 = vld [vmem:[%s1 + $0x270] sm:$0xff]
    %v121 = vld [vmem:[%s1 + $0x278] sm:$0xff]
    %v122 = vld [vmem:[%s1 + $0x280] sm:$0xff]
    %v123 = vld [vmem:[%s1 + $0x288] sm:$0xff]
    %v124 = vld [vmem:[%s1 + $0x290] sm:$0xff]
    %v125 = vld [vmem:[%s1 + $0x298] sm:$0xff]
    %v126 = vld [vmem:[%s1 + $0x2a0] sm:$0xff]
    %v127 = vld [vmem:[%s1 + $0x2a8] sm:$0xff]
    %v128 = vld [vmem:[%s1 + $0x2b0] sm:$0xff]
    %v129 = vld [vmem:[%s1 + $0x2b8] sm:$0xff]
    %v130 = vld [vmem:[%s1 + $0x2c0] sm:$0xff]
    %v131 = vld [vmem:[%s1 + $0x2c8] sm:$0xff]
    %v132 = vld [vmem:[%s1 + $0x2d0] sm:$0xff]
    %v133 = vld [vmem:[%s1 + $0x2d8] sm:$0xff]
    %v134 = vld [vmem:[%s1 + $0x2e0] sm:$0xff]
    %v135 = vld [vmem:[%s1 + $0x2e8] sm:$0xff]
    %v136 = vld [vmem:[%s1 + $0x2f0] sm:$0xff]
    %v137 = vld [vmem:[%s1 + $0x2f8] sm:$0xff]
    %v138 = vld [vmem:[%s1 + $0x300] sm:$0xff]
    %v139 = vld [vmem:[%s1 + $0x308] sm:$0xff]
    %v140 = vld [vmem:[%s2] sm:$0x1]
    %v142 = vlaneseq
    %v143 = vshrl.u32 %v142, 7
    %v144 = vsub.s32 0, %v143
    %v145 = vrot.slane %v140, %v144
    %vm147 = vcmask 130048
    %v149 = vsel %vm147, %v41, 0
    %151 = vmatprep.subr.mxu0 0.0
    %152 = vmatpush1.msra.mxu0 %v42
    %153 = vmatprep.subr.mxu0 0.0
    %154 = vmatpush1.msra.mxu0 %v43
    %155 = vmatprep.subr.mxu0 0.0
    %156 = vmatpush1.msra.mxu0 %v44
    %157 = vmatprep.subr.mxu0 0.0
    %158 = vmatpush1.msra.mxu0 %v45
    %159 = vmatprep.subr.mxu0 0.0
    %160 = vmatpush1.msra.mxu0 %v46
    %161 = vmatprep.subr.mxu0 0.0
    %162 = vmatpush1.msra.mxu0 %v47
    %163 = vmatprep.subr.mxu0 0.0
    %164 = vmatpush1.msra.mxu0 %v48
    %165 = vmatprep.subr.mxu0 0.0
    %166 = vmatpush1.msra.mxu0 %v49
    %167 = vmatprep.subr.mxu0 0.0
    %168 = vmatpush1.msra.mxu0 %v50
    %169 = vmatprep.subr.mxu0 0.0
    %170 = vmatpush1.msra.mxu0 %v51
    %171 = vmatprep.subr.mxu0 0.0
    %172 = vmatpush1.msra.mxu0 %v52
    %173 = vmatprep.subr.mxu0 0.0
    %174 = vmatpush1.msra.mxu0 %v53
    %175 = vmatprep.subr.mxu0 0.0
    %176 = vmatpush1.msra.mxu0 %v54
    %177 = vmatprep.subr.mxu0 0.0
    %178 = vmatpush1.msra.mxu0 %v55
    %179 = vmatprep.subr.mxu0 0.0
    %180 = vmatpush1.msra.mxu0 %v56
    %181 = vmatprep.subr.mxu0 0.0
    %182 = vmatpush1.msra.mxu0 %v57
    %183 = vmatprep.subr.mxu0 0.0
    %184 = vmatpush1.msra.mxu0 %v58
    %185 = vmatprep.subr.mxu0 0.0
    %186 = vmatpush1.msra.mxu0 %v59
    %187 = vmatprep.subr.mxu0 0.0
    %188 = vmatpush1.msra.mxu0 %v60
    %189 = vmatprep.subr.mxu0 0.0
    %190 = vmatpush1.msra.mxu0 %v61
    %191 = vmatprep.subr.mxu0 0.0
    %192 = vmatpush1.msra.mxu0 %v62
    %193 = vmatprep.subr.mxu0 0.0
    %194 = vmatpush1.msra.mxu0 %v63
    %195 = vmatprep.subr.mxu0 0.0
    %196 = vmatpush1.msra.mxu0 %v64
    %197 = vmatprep.subr.mxu0 0.0
    %198 = vmatpush1.msra.mxu0 %v65
    %199 = vmatprep.subr.mxu0 0.0
    %200 = vmatpush1.msra.mxu0 %v66
    %201 = vmatprep.subr.mxu0 0.0
    %202 = vmatpush1.msra.mxu0 %v67
    %203 = vmatprep.subr.mxu0 0.0
    %204 = vmatpush1.msra.mxu0 %v68
    %205 = vmatprep.subr.mxu0 0.0
    %206 = vmatpush1.msra.mxu0 %v69
    %207 = vmatprep.subr.mxu0 0.0
    %208 = vmatpush1.msra.mxu0 %v70
    %209 = vmatprep.subr.mxu0 0.0
    %210 = vmatpush1.msra.mxu0 %v71
    %211 = vmatprep.subr.mxu0 0.0
    %212 = vmatpush1.msra.mxu0 %v72
    %213 = vmatprep.subr.mxu0 0.0
    %214 = vmatpush1.msra.mxu0 %v73
    %215 = vmatprep.mubr.f32.mxu0 %v36
    %216 = vmatmul.mubr.f32.gmra.mrb[0].mxu0 %v35
    %v217 = vpop.f32.mrb[0].mxu0
    %v218 = vadd.f32 %v145, %v217
    %v219 = vpop.f32.mrb[0].mxu0
    %220 = vdwg.mxu0
    %221 = vmatprep.subr.mxu0 0.0
    %222 = vmatpush1.msra.mxu0 %v74
    %223 = vmatprep.subr.mxu0 0.0
    %224 = vmatpush1.msra.mxu0 %v75
    %225 = vmatprep.subr.mxu0 0.0
    %226 = vmatpush1.msra.mxu0 %v76
    %227 = vmatprep.subr.mxu0 0.0
    %228 = vmatpush1.msra.mxu0 %v77
    %229 = vmatprep.subr.mxu0 0.0
    %230 = vmatpush1.msra.mxu0 %v78
    %231 = vmatprep.subr.mxu0 0.0
    %232 = vmatpush1.msra.mxu0 %v79
    %233 = vmatprep.subr.mxu0 0.0
    %234 = vmatpush1.msra.mxu0 %v80
    %235 = vmatprep.subr.mxu0 0.0
    %236 = vmatpush1.msra.mxu0 %v81
    %237 = vmatprep.subr.mxu0 0.0
    %238 = vmatpush1.msra.mxu0 %v82
    %239 = vmatprep.subr.mxu0 0.0
    %240 = vmatpush1.msra.mxu0 %v83
    %241 = vmatprep.subr.mxu0 0.0
    %242 = vmatpush1.msra.mxu0 %v84
    %243 = vmatprep.subr.mxu0 0.0
    %244 = vmatpush1.msra.mxu0 %v85
    %245 = vmatprep.subr.mxu0 0.0
    %246 = vmatpush1.msra.mxu0 %v86
    %247 = vmatprep.subr.mxu0 0.0
    %248 = vmatpush1.msra.mxu0 %v87
    %249 = vmatprep.subr.mxu0 0.0
    %250 = vmatpush1.msra.mxu0 %v88
    %251 = vmatprep.subr.mxu0 0.0
    %252 = vmatpush1.msra.mxu0 %v89
    %253 = vmatprep.subr.mxu0 0.0
    %254 = vmatpush1.msra.mxu0 %v90
    %255 = vmatprep.subr.mxu0 0.0
    %256 = vmatpush1.msra.mxu0 %v91
    %257 = vmatprep.subr.mxu0 0.0
    %258 = vmatpush1.msra.mxu0 %v92
    %259 = vmatprep.subr.mxu0 0.0
    %260 = vmatpush1.msra.mxu0 %v93
    %261 = vmatprep.subr.mxu0 0.0
    %262 = vmatpush1.msra.mxu0 %v94
    %263 = vmatprep.subr.mxu0 0.0
    %264 = vmatpush1.msra.mxu0 %v95
    %265 = vmatprep.subr.mxu0 0.0
    %266 = vmatpush1.msra.mxu0 %v96
    %267 = vmatprep.subr.mxu0 0.0
    %268 = vmatpush1.msra.mxu0 %v97
    %269 = vmatprep.subr.mxu0 0.0
    %270 = vmatpush1.msra.mxu0 %v98
    %271 = vmatprep.subr.mxu0 0.0
    %272 = vmatpush1.msra.mxu0 %v99
    %273 = vmatprep.subr.mxu0 0.0
    %274 = vmatpush1.msra.mxu0 %v100
    %275 = vmatprep.subr.mxu0 0.0
    %276 = vmatpush1.msra.mxu0 %v101
    %277 = vmatprep.subr.mxu0 0.0
    %278 = vmatpush1.msra.mxu0 %v102
    %279 = vmatprep.subr.mxu0 0.0
    %280 = vmatpush1.msra.mxu0 %v103
    %281 = vmatprep.subr.mxu0 0.0
    %282 = vmatpush1.msra.mxu0 %v104
    %283 = vmatprep.subr.mxu0 0.0
    %284 = vmatpush1.msra.mxu0 %v105
    %285 = vmatprep.mubr.f32.mxu0 %v38
    %286 = vmatmul.mubr.f32.gmra.mrb[0].mxu0 %v37
    %v287 = vpop.f32.mrb[0].mxu0
    %v288 = vadd.f32 %v218, %v287
    %v289 = vpop.f32.mrb[0].mxu0
    %290 = vdwg.mxu0
    %291 = vmatprep.subr.mxu0 0.0
    %292 = vmatpush1.msra.mxu0 %v106
    %293 = vmatprep.subr.mxu0 0.0
    %294 = vmatpush1.msra.mxu0 %v107
    %295 = vmatprep.subr.mxu0 0.0
    %296 = vmatpush1.msra.mxu0 %v108
    %297 = vmatprep.subr.mxu0 0.0
    %298 = vmatpush1.msra.mxu0 %v109
    %299 = vmatprep.subr.mxu0 0.0
    %300 = vmatpush1.msra.mxu0 %v110
    %301 = vmatprep.subr.mxu0 0.0
    %302 = vmatpush1.msra.mxu0 %v111
    %303 = vmatprep.subr.mxu0 0.0
    %304 = vmatpush1.msra.mxu0 %v112
    %305 = vmatprep.subr.mxu0 0.0
    %306 = vmatpush1.msra.mxu0 %v113
    %307 = vmatprep.subr.mxu0 0.0
    %308 = vmatpush1.msra.mxu0 %v114
    %309 = vmatprep.subr.mxu0 0.0
    %310 = vmatpush1.msra.mxu0 %v115
    %311 = vmatprep.subr.mxu0 0.0
    %312 = vmatpush1.msra.mxu0 %v116
    %313 = vmatprep.subr.mxu0 0.0
    %314 = vmatpush1.msra.mxu0 %v117
    %315 = vmatprep.subr.mxu0 0.0
    %316 = vmatpush1.msra.mxu0 %v118
    %317 = vmatprep.subr.mxu0 0.0
    %318 = vmatpush1.msra.mxu0 %v119
    %319 = vmatprep.subr.mxu0 0.0
    %320 = vmatpush1.msra.mxu0 %v120
    %321 = vmatprep.subr.mxu0 0.0
    %322 = vmatpush1.msra.mxu0 %v121
    %323 = vmatprep.subr.mxu0 0.0
    %324 = vmatpush1.msra.mxu0 %v122
    %325 = vmatprep.subr.mxu0 0.0
    %326 = vmatpush1.msra.mxu0 %v123
    %327 = vmatprep.subr.mxu0 0.0
    %328 = vmatpush1.msra.mxu0 %v124
    %329 = vmatprep.subr.mxu0 0.0
    %330 = vmatpush1.msra.mxu0 %v125
    %331 = vmatprep.subr.mxu0 0.0
    %332 = vmatpush1.msra.mxu0 %v126
    %333 = vmatprep.subr.mxu0 0.0
    %334 = vmatpush1.msra.mxu0 %v127
    %335 = vmatprep.subr.mxu0 0.0
    %336 = vmatpush1.msra.mxu0 %v128
    %337 = vmatprep.subr.mxu0 0.0
    %338 = vmatpush1.msra.mxu0 %v129
    %339 = vmatprep.subr.mxu0 0.0
    %340 = vmatpush1.msra.mxu0 %v130
    %341 = vmatprep.subr.mxu0 0.0
    %342 = vmatpush1.msra.mxu0 %v131
    %343 = vmatprep.subr.mxu0 0.0
    %344 = vmatpush1.msra.mxu0 %v132
    %345 = vmatprep.subr.mxu0 0.0
    %346 = vmatpush1.msra.mxu0 %v133
    %347 = vmatprep.subr.mxu0 0.0
    %348 = vmatpush1.msra.mxu0 %v134
    %349 = vmatprep.subr.mxu0 0.0
    %350 = vmatpush1.msra.mxu0 %v135
    %351 = vmatprep.subr.mxu0 0.0
    %352 = vmatpush1.msra.mxu0 %v136
    %353 = vmatprep.subr.mxu0 0.0
    %354 = vmatpush1.msra.mxu0 %v137
    %355 = vmatprep.mubr.f32.mxu0 %v40
    %356 = vmatmul.mubr.f32.gmra.mrb[0].mxu0 %v39
    %v357 = vpop.f32.mrb[0].mxu0
    %v358 = vadd.f32 %v288, %v357
    %v359 = vpop.f32.mrb[0].mxu0
    %360 = vdwg.mxu0
    %361 = vmatprep.subr.mxu0 0.0
    %362 = vmatpush1.msra.mxu0 %v138
    %363 = vmatprep.subr.mxu0 0.0
    %364 = vmatpush1.msra.mxu0 %v139
    %365 = vmatprep.subr.mxu0 0.0
    %366 = vmatpush1.msra.mxu0 0.0
    %367 = vmatprep.subr.mxu0 0.0
    %368 = vmatpush1.msra.mxu0 0.0
    %369 = vmatprep.subr.mxu0 0.0
    %370 = vmatpush1.msra.mxu0 0.0
    %371 = vmatprep.subr.mxu0 0.0
    %372 = vmatpush1.msra.mxu0 0.0
    %373 = vmatprep.subr.mxu0 0.0
    %374 = vmatpush1.msra.mxu0 0.0
    %375 = vmatprep.subr.mxu0 0.0
    %376 = vmatpush1.msra.mxu0 0.0
    %377 = vmatprep.subr.mxu0 0.0
    %378 = vmatpush1.msra.mxu0 0.0
    %379 = vmatprep.subr.mxu0 0.0
    %380 = vmatpush1.msra.mxu0 0.0
    %381 = vmatprep.subr.mxu0 0.0
    %382 = vmatpush1.msra.mxu0 0.0
    %383 = vmatprep.subr.mxu0 0.0
    %384 = vmatpush1.msra.mxu0 0.0
    %385 = vmatprep.subr.mxu0 0.0
    %386 = vmatpush1.msra.mxu0 0.0
    %387 = vmatprep.subr.mxu0 0.0
    %388 = vmatpush1.msra.mxu0 0.0
    %389 = vmatprep.subr.mxu0 0.0
    %390 = vmatpush1.msra.mxu0 0.0
    %391 = vmatprep.subr.mxu0 0.0
    %392 = vmatpush1.msra.mxu0 0.0
    %393 = vmatprep.subr.mxu0 0.0
    %394 = vmatpush1.msra.mxu0 0.0
    %395 = vmatprep.subr.mxu0 0.0
    %396 = vmatpush1.msra.mxu0 0.0
    %397 = vmatprep.subr.mxu0 0.0
    %398 = vmatpush1.msra.mxu0 0.0
    %399 = vmatprep.subr.mxu0 0.0
    %400 = vmatpush1.msra.mxu0 0.0
    %401 = vmatprep.subr.mxu0 0.0
    %402 = vmatpush1.msra.mxu0 0.0
    %403 = vmatprep.subr.mxu0 0.0
    %404 = vmatpush1.msra.mxu0 0.0
    %405 = vmatprep.subr.mxu0 0.0
    %406 = vmatpush1.msra.mxu0 0.0
    %407 = vmatprep.subr.mxu0 0.0
    %408 = vmatpush1.msra.mxu0 0.0
    %409 = vmatprep.subr.mxu0 0.0
    %410 = vmatpush1.msra.mxu0 0.0
    %411 = vmatprep.subr.mxu0 0.0
    %412 = vmatpush1.msra.mxu0 0.0
    %413 = vmatprep.subr.mxu0 0.0
    %414 = vmatpush1.msra.mxu0 0.0
    %415 = vmatprep.subr.mxu0 0.0
    %416 = vmatpush1.msra.mxu0 0.0
    %417 = vmatprep.subr.mxu0 0.0
    %418 = vmatpush1.msra.mxu0 0.0
    %419 = vmatprep.subr.mxu0 0.0
    %420 = vmatpush1.msra.mxu0 0.0
    %421 = vmatprep.subr.mxu0 0.0
    %422 = vmatpush1.msra.mxu0 0.0
    %423 = vmatprep.subr.mxu0 0.0
    %424 = vmatpush1.msra.mxu0 0.0
    %425 = vmatprep.mubr.f32.mxu0 0.0
    %426 = vmatmul.mubr.f32.gmra.mrb[0].mxu0 %v149
    %v427 = vpop.f32.mrb[0].mxu0
    %v428 = vadd.f32 %v358, %v427
    %v429 = vpop.f32.mrb[0].mxu0
    %430 = vdwg.mxu0
    %v431 = vmax.f32 %v428, 0.0
    %v432 = vld [vmem:[#allocation2] sm:$0xff]
    %v433 = vld [vmem:[#allocation2 + $0x8] sm:$0xff]
    %v434 = vld [vmem:[#allocation2 + $0x10] sm:$0xff]
    %v435 = vld [vmem:[#allocation2 + $0x18] sm:$0xff]
    %v436 = vld [vmem:[#allocation2 + $0x20] sm:$0xff]
    %v437 = vld [vmem:[#allocation2 + $0x28] sm:$0xff]
    %v438 = vld [vmem:[#allocation2 + $0x30] sm:$0xff]
    %v439 = vld [vmem:[#allocation2 + $0x38] sm:$0xff]
    %v440 = vld [vmem:[#allocation2 + $0x40] sm:$0xff]
    %v441 = vld [vmem:[#allocation2 + $0x48] sm:$0xff]
    %v442 = vld [vmem:[#allocation2 + $0x50] sm:$0xff]
    %v443 = vld [vmem:[#allocation2 + $0x58] sm:$0xff]
    %v444 = vld [vmem:[#allocation2 + $0x60] sm:$0xff]
    %v445 = vld [vmem:[#allocation2 + $0x68] sm:$0xff]
    %v446 = vld [vmem:[#allocation2 + $0x70] sm:$0xff]
    %v447 = vld [vmem:[#allocation2 + $0x78] sm:$0xff]
    %v448 = vld [vmem:[%s4] sm:$0x1]
    %v450 = vlaneseq
    %v451 = vshrl.u32 %v450, 7
    %v452 = vsub.s32 0, %v451
    %v453 = vrot.slane %v448, %v452
    %455 = vmatprep.subr.mxu0 0.0
    %456 = vmatpush1.msra.mxu0 %v432
    %457 = vmatprep.subr.mxu0 0.0
    %458 = vmatpush1.msra.mxu0 %v433
    %459 = vmatprep.subr.mxu0 0.0
    %460 = vmatpush1.msra.mxu0 %v434
    %461 = vmatprep.subr.mxu0 0.0
    %462 = vmatpush1.msra.mxu0 %v435
    %463 = vmatprep.subr.mxu0 0.0
    %464 = vmatpush1.msra.mxu0 %v436
    %465 = vmatprep.subr.mxu0 0.0
    %466 = vmatpush1.msra.mxu0 %v437
    %467 = vmatprep.subr.mxu0 0.0
    %468 = vmatpush1.msra.mxu0 %v438
    %469 = vmatprep.subr.mxu0 0.0
    %470 = vmatpush1.msra.mxu0 %v439
    %471 = vmatprep.subr.mxu0 0.0
    %472 = vmatpush1.msra.mxu0 %v440
    %473 = vmatprep.subr.mxu0 0.0
    %474 = vmatpush1.msra.mxu0 %v441
    %475 = vmatprep.subr.mxu0 0.0
    %476 = vmatpush1.msra.mxu0 %v442
    %477 = vmatprep.subr.mxu0 0.0
    %478 = vmatpush1.msra.mxu0 %v443
    %479 = vmatprep.subr.mxu0 0.0
    %480 = vmatpush1.msra.mxu0 %v444
    %481 = vmatprep.subr.mxu0 0.0
    %482 = vmatpush1.msra.mxu0 %v445
    %483 = vmatprep.subr.mxu0 0.0
    %484 = vmatpush1.msra.mxu0 %v446
    %485 = vmatprep.subr.mxu0 0.0
    %486 = vmatpush1.msra.mxu0 %v447
    %487 = vmatprep.subr.mxu0 0.0
    %488 = vmatpush1.msra.mxu0 0.0
    %489 = vmatprep.subr.mxu0 0.0
    %490 = vmatpush1.msra.mxu0 0.0
    %491 = vmatprep.subr.mxu0 0.0
    %492 = vmatpush1.msra.mxu0 0.0
    %493 = vmatprep.subr.mxu0 0.0
    %494 = vmatpush1.msra.mxu0 0.0
    %495 = vmatprep.subr.mxu0 0.0
    %496 = vmatpush1.msra.mxu0 0.0
    %497 = vmatprep.subr.mxu0 0.0
    %498 = vmatpush1.msra.mxu0 0.0
    %499 = vmatprep.subr.mxu0 0.0
    %500 = vmatpush1.msra.mxu0 0.0
    %501 = vmatprep.subr.mxu0 0.0
    %502 = vmatpush1.msra.mxu0 0.0
    %503 = vmatprep.subr.mxu0 0.0
    %504 = vmatpush1.msra.mxu0 0.0
    %505 = vmatprep.subr.mxu0 0.0
    %506 = vmatpush1.msra.mxu0 0.0
    %507 = vmatprep.subr.mxu0 0.0
    %508 = vmatpush1.msra.mxu0 0.0
    %509 = vmatprep.subr.mxu0 0.0
    %510 = vmatpush1.msra.mxu0 0.0
    %511 = vmatprep.subr.mxu0 0.0
    %512 = vmatpush1.msra.mxu0 0.0
    %513 = vmatprep.subr.mxu0 0.0
    %514 = vmatpush1.msra.mxu0 0.0
    %515 = vmatprep.subr.mxu0 0.0
    %516 = vmatpush1.msra.mxu0 0.0
    %517 = vmatprep.subr.mxu0 0.0
    %518 = vmatpush1.msra.mxu0 0.0
    %519 = vmatprep.mubr.f32.mxu0 0.0
    %520 = vmatmul.mubr.f32.gmra.mrb[0].mxu0 %v431
    %v521 = vpop.f32.mrb[0].mxu0
    %v522 = vadd.f32 %v453, %v521
    %v523 = vpop.f32.mrb[0].mxu0
    %524 = vdwg.mxu0
    %525 = vst [vmem:[#allocation5] sm:$0xff] %v522
    // Predicated region
    $region26: #{mlp_net_forward.1} parent=1 // pred_check
      _
    $region27: #{mlp_net_forward.1} parent=1 // pred_check_branch
      %527 = sbr.rel (0) target = $region29
    $region28: #{mlp_net_forward.1} parent=1 // pred_region
      %s529 = ssub.s32 128, 128
      %530 = vsyncadd [#allocation4], %s529
      %s532 = sshll.u32 [#allocation5], 4
      %s533 = int_to_ptr.vmem [resolvable:$true] %s532
      %535 = dma.vmem_to_hbm [thread:$0]  %s533, 128, %s5, [#allocation4]
    $region29: #{mlp_net_forward.1} parent=1 // pred_fallthru
      _
    // Predicated region
    $region30: #{mlp_net_forward.1} parent=1 // pred_check
      _
    $region31: #{mlp_net_forward.1} parent=1 // pred_check_branch
      %537 = sbr.rel (0) target = $region33
    $region32: #{mlp_net_forward.1} parent=1 // pred_region
      %538 = dma.done [#allocation4], 128
    $region33: #{mlp_net_forward.1} parent=1 // pred_fallthru
      _
    %539 = vsyncpa [#allocation3], 1
    %540 = vsyncpa [#allocation4], 1

</llo_original>
